<compile_context>
chip_gen: v6e
topology: v6e:2x2x1
jax: 0.10.0
libtpu: 0.0.40
codegen_flags: <defaults>
</compile_context>

<pallas_src>
import functools
import math

import jax
import jax.numpy as jnp
from jax.experimental import pallas as pl
from jax.experimental.pallas import tpu as pltpu

BN_EPS = 1e-5
MASK_FILL = -1e-6   # matches torch masked_fill_(float(-1e-06)) exactly


# ------------------------- generation-aware sizing helpers -------------------------

def _vmem_cap_bytes():
    """Physical VMEM per core (128 MiB v5e/v6e, 64 MiB v7x); safe fallback."""
    try:
        cap = int(pltpu.get_tpu_info().vmem_capacity_bytes)
        if cap > 0:
            return cap
    except Exception:
        pass
    return 128 << 20


def _scoped_vmem_limit():
    """Scoped-VMEM request with Mosaic headroom: ~48 MiB on v7x, ~112 MiB on v5e/v6e."""
    return int(min(_vmem_cap_bytes() - (16 << 20), 112 << 20))


def _tile_caps(vmem_limit):
    """(fout_cap, k_cap) for the backbone matmul tiles, per generation."""
    if vmem_limit <= (48 << 20):     # v7x-class (64 MiB physical VMEM)
        return 512, 2048
    return 1024, 4096                # v5e / v6e (128 MiB physical VMEM)


def _pick_fout_tile(fout, cap):
    # Lane-dense output tiles; prefer >=4 tiles so dual-TC chips (v7x) get >=2 grid
    # steps per core and the weight DMA can double-buffer.
    if fout <= 128 or fout % 128 != 0:
        return fout
    target = min(cap, max(128, (fout // 4) // 128 * 128))
    for t in range(target, 127, -128):
        if fout % t == 0:
            return t
    return fout


def _pick_k_tile(k, cap):
    if k <= cap or k % 128 != 0:
        return k
    for t in range(cap, 127, -128):
        if k % t == 0:
            return t
    return k


def _pick_nh_tile(nh, n, d, hid, budget):
    """attn_w streaming tile: lane-dense, >=2 grid steps when possible, sized so the
    double-buffered streamed blocks (attn_w slab + fc1 slab + BN vectors) fit budget."""
    if nh <= 256 or nh % 128 != 0:
        return nh
    cap = max(128, (nh // 2) // 128 * 128)
    best = 128
    for t in range(128, cap + 1, 128):
        if nh % t:
            continue
        streamed = 2 * ((n * d * t + t * hid) * 2 + 3 * t * 4)
        if streamed <= budget:
            best = t
    return best


def _lane_pad(n):
    return max(128, ((n + 127) // 128) * 128)


# ---------------------------------- Pallas kernels ----------------------------------

def _bn_relu(y, gamma, beta, eps):
    """BatchNorm1d (training-mode biased batch stats over axis 0, the PyTorch default
    for a forward() on a fresh module) + ReLU, in f32 (v5e-safe epilogue)."""
    mu = jnp.mean(y, axis=0, keepdims=True)
    var = jnp.mean(jnp.square(y - mu), axis=0, keepdims=True)
    return jnp.maximum((y - mu) * jax.lax.rsqrt(var + eps) * gamma + beta, 0.0)


def _backbone_kernel(x_ref, w_ref, b_ref, o_ref, acc_ref):
    """feats[:, j-tile] = imgs @ W + b.  K-tiled reduction into an f32 VMEM scratch
    accumulator; bf16 feats stored once on the last K step (no f32 HBM RMW)."""
    @pl.when(pl.program_id(1) == 0)
    def _():
        acc_ref[...] = jnp.broadcast_to(b_ref[...], acc_ref.shape)

    acc_ref[...] += jnp.dot(x_ref[...], w_ref[...],
                            preferred_element_type=jnp.float32)

    @pl.when(pl.program_id(1) == pl.num_programs(1) - 1)
    def _():
        o_ref[...] = acc_ref[...].astype(o_ref.dtype)


def _obstacle_head_kernel(scene_ref, target_ref, object_ref, bbox_ref, pad_ref,
                          wa_ref, ba_ref, ga_ref, bba_ref,
                          w1a_ref, w1b_ref, b1_ref, g1_ref, bb1_ref,
                          w2_ref, b2_ref,
                          o_ref, diff_ref, hacc_ref,
                          *, inv_sqrt_n, eps, fill):
    """Fused ObstacleHead.spatial_rel head (everything after the backbone).

    Grid axis streams attn_w over its N*H output axis; features stay resident in
    patch-major (N, B, D) layout so the softmax reduction and the batched MXU dots
    never relayout lanes/sublanes.  bf16 operands, f32 accumulation, f32 epilogue.
    """
    j = pl.program_id(0)

    # Step 0: scaled elementwise attention + softmax over the patch (leading) axis.
    # diff is computed once into a bf16 scratch (one cast, reused every step); the
    # softmax denominator reciprocal runs on the EUP (approx) — free VALU relief.
    @pl.when(j == 0)
    def _():
        obj = object_ref[...].astype(jnp.float32)      # (N, B, D)
        tgt = target_ref[...].astype(jnp.float32)      # (1, B, D)
        scn = scene_ref[...].astype(jnp.float32)       # (1, B, D)
        aw = obj * tgt * inv_sqrt_n
        m = jnp.max(aw, axis=0, keepdims=True)
        e = jnp.exp(aw - m)
        inv = pl.reciprocal(jnp.sum(e, axis=0, keepdims=True), approx=True)
        diff_ref[...] = (obj - e * (scn * inv)).astype(diff_ref.dtype)
        hacc_ref[...] = jnp.zeros_like(hacc_ref)

    # attn Linear tile: y[:, j-tile] = sum_n diff[n] @ attn_w[n, :, j-tile] + b.
    # One batched dot_general over the leading patch axis (no unrolled dot chain),
    # then BatchNorm1d + ReLU (per-feature => exact per tile), then fold this tile's
    # contribution into the resident fc1 accumulator.
    y = jnp.einsum("nbd,ndh->nbh", diff_ref[...], wa_ref[...],
                   preferred_element_type=jnp.float32)
    y = jnp.sum(y, axis=0) + ba_ref[...]               # (B, nh_tile)
    y = _bn_relu(y, ga_ref[...], bba_ref[...], eps)
    hacc_ref[...] += jnp.dot(y.astype(w1a_ref.dtype), w1a_ref[...],
                             preferred_element_type=jnp.float32)

    # Last step: bbox slab of fc1 (the per-patch [attn | bbox] concat folded into two
    # weight slabs) + BN + ReLU, fc2 (output lane-padded to 128), padding-mask fill.
    @pl.when(j == pl.num_programs(0) - 1)
    def _():
        h = (hacc_ref[...]
             + jnp.dot(bbox_ref[...].astype(w1b_ref.dtype), w1b_ref[...],
                       preferred_element_type=jnp.float32)
             + b1_ref[...])
        h = _bn_relu(h, g1_ref[...], bb1_ref[...], eps)     # (B, H)
        scores = jnp.dot(h.astype(w2_ref.dtype), w2_ref[...],
                         preferred_element_type=jnp.float32) + b2_ref[...]   # (B, P)
        o_ref[...] = jnp.where(pad_ref[...] != 0.0, jnp.float32(fill), scores)


# --------------------------------- Pallas wrappers ----------------------------------

def pallas_backbone(x, w, b):
    """bf16 feats = x @ w + b ; K-tiled 'arbitrary' reduction, fout 'parallel'."""
    m, kdim = x.shape
    fout = w.shape[1]
    vmem_limit = _scoped_vmem_limit()
    fcap, kcap = _tile_caps(vmem_limit)
    tf = _pick_fout_tile(fout, fcap)
    tk = _pick_k_tile(kdim, kcap)
    grid = (fout // tf, kdim // tk)

    est = (2 * (m * tk * x.dtype.itemsize + tk * tf * w.dtype.itemsize + tf * 4)
           + m * tf * 4 + 2 * m * tf * 2)
    limit = int(min(max(2 * est, 16 << 20), vmem_limit))

    return pl.pallas_call(
        _backbone_kernel,
        out_shape=jax.ShapeDtypeStruct((m, fout), jnp.bfloat16),
        grid=grid,
        in_specs=[
            pl.BlockSpec((m, tk), lambda j, k: (0, k)),
            pl.BlockSpec((tk, tf), lambda j, k: (k, j)),
            pl.BlockSpec((1, tf), lambda j, k: (0, j)),
        ],
        out_specs=pl.BlockSpec((m, tf), lambda j, k: (0, j)),
        scratch_shapes=[pltpu.VMEM((m, tf), jnp.float32)],
        compiler_params=pltpu.CompilerParams(
            dimension_semantics=("parallel", "arbitrary"),
            vmem_limit_bytes=limit),
    )(x, w, b.reshape(1, fout))


def pallas_obstacle_head(scene_f, target_f, object_f, bbox_flat, pad_mask, params,
                         *, eps=BN_EPS, fill=MASK_FILL):
    """One fused pallas_call for the whole post-backbone head, streaming attn_w."""
    n, b, d = object_f.shape
    nh = params["attn_b"].shape[0]
    hid = params["fc1_b"].shape[0]
    p = params["fc2_b"].shape[0]

    vmem_limit = _scoped_vmem_limit()
    t = _pick_nh_tile(nh, n, d, hid, vmem_limit // 2)
    grid = (nh // t,)

    resident = ((2 + n) * b * d) * 2 + b * p * 4 + b * 4 * n * 4 \
        + 4 * n * hid * 2 + 3 * hid * 4 + hid * p * 2 + p * 4 + b * p * 4
    streamed = 2 * ((n * d * t + t * hid) * 2 + 3 * t * 4)
    scratch = n * b * d * 2 + b * hid * 4
    limit = int(min(max(2 * (resident + streamed + scratch), 16 << 20), vmem_limit))

    kernel = functools.partial(_obstacle_head_kernel,
                               inv_sqrt_n=1.0 / math.sqrt(n), eps=eps, fill=fill)

    return pl.pallas_call(
        kernel,
        out_shape=jax.ShapeDtypeStruct((b, p), jnp.float32),
        grid=grid,
        in_specs=[
            pl.BlockSpec((1, b, d), lambda j: (0, 0, 0)),     # scene feats (resident)
            pl.BlockSpec((1, b, d), lambda j: (0, 0, 0)),     # target feats
            pl.BlockSpec((n, b, d), lambda j: (0, 0, 0)),     # object feats
            pl.BlockSpec((b, 4 * n), lambda j: (0, 0)),       # bbox (B, 4N)
            pl.BlockSpec((b, p), lambda j: (0, 0)),           # empty-patch mask (B, P)
            pl.BlockSpec((n, d, t), lambda j: (0, 0, j)),     # attn_w  (streamed)
            pl.BlockSpec((1, t), lambda j: (0, j)),           # attn bias
            pl.BlockSpec((1, t), lambda j: (0, j)),           # attn BN gamma
            pl.BlockSpec((1, t), lambda j: (0, j)),           # attn BN beta
            pl.BlockSpec((t, hid), lambda j: (j, 0)),         # fc1 attn rows (streamed)
            pl.BlockSpec((4 * n, hid), lambda j: (0, 0)),     # fc1 bbox rows
            pl.BlockSpec((1, hid), lambda j: (0, 0)),         # fc1 bias
            pl.BlockSpec((1, hid), lambda j: (0, 0)),         # fc1 BN gamma
            pl.BlockSpec((1, hid), lambda j: (0, 0)),         # fc1 BN beta
            pl.BlockSpec((hid, p), lambda j: (0, 0)),         # fc2 weight (lane-padded)
            pl.BlockSpec((1, p), lambda j: (0, 0)),           # fc2 bias
        ],
        out_specs=pl.BlockSpec((b, p), lambda j: (0, 0)),
        scratch_shapes=[pltpu.VMEM((n, b, d), jnp.bfloat16),   # diff (bf16, one cast)
                        pltpu.VMEM((b, hid), jnp.float32)],    # fc1 accumulator
        compiler_params=pltpu.CompilerParams(
            dimension_semantics=("arbitrary",),
            vmem_limit_bytes=limit),
    )(scene_f, target_f, object_f, bbox_flat, pad_mask,
      params["attn_w"],
      params["attn_b"].reshape(1, nh), params["attn_g"].reshape(1, nh),
      params["attn_beta"].reshape(1, nh),
      params["fc1_wa"], params["fc1_wb"],
      params["fc1_b"].reshape(1, hid), params["fc1_g"].reshape(1, hid),
      params["fc1_beta"].reshape(1, hid),
      params["fc2_w"], params["fc2_b"].reshape(1, p))


# ------------------------------------ parameters ------------------------------------

def init_params(key, hw, feat_dim, num_patches, hidden_dim):
    """Deterministic synthetic parameters, already in the kernel-friendly layout.

    Mapping to the PyTorch module (weights are synthesised, so the layout
    transforms below are definitional, not runtime work):
      bb_w (H*W, D)        -> resnet50+fc stand-in with the 3x channel repeat
                              collapsed into one weight (W0+W1+W2); see TODO above.
      attn_w (N, D, N*H)   -> attn[0].weight.T.reshape(N, D, N*H)
      fc1_wa (N*H, H)      -> fc[0].weight.T rows for the attn part of the per-patch
      fc1_wb (N*4, H)         [attn | bbox] concat; fc1_wb is the bbox rows.
      fc2_w (H, P)         -> fc[3].weight.T zero-padded from N to P=128 lanes.
    Matmul weights are bf16 (f32 MXU accumulation); BN params / biases stay f32.
    """
    k0, k1, k2, k3, k4 = jax.random.split(key, 5)
    scale = 0.02
    nh = num_patches * hidden_dim
    p = _lane_pad(num_patches)

    def gauss(k, shape):
        return jax.random.normal(k, shape, jnp.float32) * scale

    fc2 = gauss(k4, (hidden_dim, num_patches))
    return {
        "bb_w": gauss(k0, (hw, feat_dim)).astype(jnp.bfloat16),
        "bb_b": jnp.zeros((feat_dim,), jnp.float32),
        "attn_w": gauss(k1, (num_patches, feat_dim, nh)).astype(jnp.bfloat16),
        "attn_b": jnp.zeros((nh,), jnp.float32),
        "attn_g": jnp.ones((nh,), jnp.float32),
        "attn_beta": jnp.zeros((nh,), jnp.float32),
        "fc1_wa": gauss(k2, (nh, hidden_dim)).astype(jnp.bfloat16),
        "fc1_wb": gauss(k3, (num_patches * 4, hidden_dim)).astype(jnp.bfloat16),
        "fc1_b": jnp.zeros((hidden_dim,), jnp.float32),
        "fc1_g": jnp.ones((hidden_dim,), jnp.float32),
        "fc1_beta": jnp.zeros((hidden_dim,), jnp.float32),
        "fc2_w": jnp.pad(fc2, ((0, 0), (0, p - num_patches))).astype(jnp.bfloat16),
        "fc2_b": jnp.zeros((p,), jnp.float32),
    }


# ----------------------------------- forward pass -----------------------------------

def res_fcn_forward(params, depth_heightmap, target_mask, object_masks, bboxes,
                    *, seq_len, seed=0):
    """Equivalent of ResFCN.forward(...) -> (object_scores, out_probs).

    depth_heightmap: (B, 1, H, W)   (plays scene_mask in ObstacleHead)
    target_mask:     (B, 1, H, W)
    object_masks:    (B, N, 1, H, W)
    bboxes:          (B, N, 4)
    """
    B, N, C, H, W = object_masks.shape
    HW = H * W

    # --- backbone stand-in: patch-major image rows -> one batched MXU matmul.
    # Patch-major concat makes feats[2B:] -> (N, B, D) a free view (no feats
    # transpose between the two pallas_calls).  Note: M = B*(N+2) rows is tiny, so
    # this matmul is weight-streaming bound; batching multiple forward calls is the
    # only structural lever for MXU utilization.
    obj_rows = object_masks.reshape(B, N, HW).transpose(1, 0, 2).reshape(N * B, HW)
    imgs = jnp.concatenate([
        depth_heightmap.reshape(B, HW),
        target_mask.reshape(B, HW),
        obj_rows,
    ], axis=0).astype(jnp.bfloat16)                               # (B*(N+2), HW)
    feats = pallas_backbone(imgs, params["bb_w"], params["bb_b"])  # (B*(N+2), D) bf16
    D = feats.shape[-1]

    scene_f = feats[:B][None]                                      # (1, B, D)
    target_f = feats[B:2 * B][None]                                # (1, B, D)
    object_f = feats[2 * B:].reshape(N, B, D)                      # (N, B, D) free view

    # Tiny wrapper-side plumbing (no big slabs into the head):
    bbox_flat = bboxes.reshape(B, N * 4).astype(jnp.float32)       # (B, 4N)
    P = params["fc2_b"].shape[0]
    # Empty-patch predicate: one XLA reduce -> (B, P) f32 (1.0 == padded patch).
    # Equivalent to torch's object_masks.sum(dim=(2,3)) == 0 for non-negative masks,
    # robust to sign cancellation.
    pad = jnp.all(object_masks.reshape(B, N, -1) == 0.0, axis=-1)  # (B, N) bool
    pad = jnp.pad(pad, ((0, 0), (0, P - N))).astype(jnp.float32)   # (B, P)

    # --- fused head: attention + softmax + attn/fc Linears+BN+ReLU + mask fill.
    scores_slab = pallas_obstacle_head(scene_f, target_f, object_f,
                                       bbox_flat, pad, params)     # (B, P)
    scores = scores_slab[:, :N]                                    # (B, N)

    # topk indices (printed but not returned by the torch forward) -- JAX glue.
    _, _top_indices = jax.lax.top_k(scores, k=seq_len)

    # ResFCN.forward: out_probs = torch.rand(16, C, H, W)
    # TODO(synk): host RNG replaced by jax.random (not a compute kernel;
    # pltpu.prng_* has no CPU/interpret-mode lowering).
    out_probs = jax.random.uniform(jax.random.PRNGKey(seed), (16, C, H, W),
                                   jnp.float32)
    return scores, out_probs


# --------------------------------------- main ---------------------------------------

if __name__ == "__main__":
    key = jax.random.PRNGKey(0)
    B, N, C, H, W = 2, 8, 1, 16, 16          # num_patches = 8
    FEAT_DIM, HIDDEN, SEQ_LEN = 256, 128, 4  # scaled-down stand-ins for 2048 / 1024

    k_in, k_par = jax.random.split(key)
    k1, k2, k3, k4 = jax.random.split(k_in, 4)
    depth_heightmap = jax.random.uniform(k1, (B, 1, H, W), jnp.float32)
    target_mask = jax.random.uniform(k2, (B, 1, H, W), jnp.float32)
    object_masks = jax.random.uniform(k3, (B, N, C, H, W), jnp.float32)
    # make the last patch of every batch element empty to exercise the padding mask
    object_masks = object_masks.at[:, -1].set(0.0)
    bboxes = jax.random.uniform(k4, (B, N, 4), jnp.float32)

    params = init_params(k_par, H * W, FEAT_DIM, N, HIDDEN)

    object_scores, out_probs = res_fcn_forward(
        params, depth_heightmap, target_mask, object_masks, bboxes,
        seq_len=SEQ_LEN, seed=0)
    jax.block_until_ready((object_scores, out_probs))

    assert object_scores.shape == (B, N) and object_scores.dtype == jnp.float32
    assert out_probs.shape == (16, C, H, W) and out_probs.dtype == jnp.float32
    # padded (all-zero) patches must be masked to -1e-6 (exact, matches torch ref)
    assert bool(jnp.all(object_scores[:, -1] == jnp.float32(MASK_FILL)))
    # non-padded scores must be finite
    assert bool(jnp.all(jnp.isfinite(object_scores)))

    print("KERNEL_OK")
</pallas_src>

<mosaic_0001>
module attributes {stable_mosaic.version = 11 : i64} {
  func.func @_backbone_kernel(%arg0: i32, %arg1: i32, %arg2: memref<20x256xbf16, #tpu.memory_space<vmem>>, %arg3: memref<256x128xbf16, #tpu.memory_space<vmem>>, %arg4: memref<1x128xf32, #tpu.memory_space<vmem>>, %arg5: memref<20x128xbf16, #tpu.memory_space<vmem>>, %arg6: memref<20x128xf32, #tpu.memory_space<vmem>>) attributes {dimension_semantics = [#tpu.dimension_semantics<parallel>, #tpu.dimension_semantics<arbitrary>], iteration_bounds = array<i64: 2, 1>, scalar_prefetch = 0 : i64, scratch_operands = 1 : i64, tpu.core_type = #tpu.core_type<tc>, window_params = [{transform_indices = @transform_0, window_bounds = array<i64: 20, 256>}, {transform_indices = @transform_1, window_bounds = array<i64: 256, 128>}, {transform_indices = @transform_2, window_bounds = array<i64: 1, 128>}, {transform_indices = @transform_3, window_bounds = array<i64: 20, 128>}]} {
    %c0_i32 = arith.constant 0 : i32
    %0 = arith.cmpi eq, %arg1, %c0_i32 : i32
    %1 = arith.extui %0 : i1 to i32
    %c0_i32_0 = arith.constant 0 : i32
    %2 = arith.cmpi ne, %1, %c0_i32_0 : i32
    scf.if %2 {
      %c0_10 = arith.constant 0 : index
      %c0_11 = arith.constant 0 : index
      %12 = vector.load %arg4[%c0_10, %c0_11] : memref<1x128xf32, #tpu.memory_space<vmem>>, vector<1x128xf32>
      %13 = vector.shape_cast %12 : vector<1x128xf32> to vector<1x128xf32>
      %14 = vector.broadcast %13 : vector<1x128xf32> to vector<20x128xf32>
      %c0_12 = arith.constant 0 : index
      %c0_13 = arith.constant 0 : index
      %15 = vector.load %arg6[%c0_12, %c0_13] : memref<20x128xf32, #tpu.memory_space<vmem>>, vector<20x128xf32>
      tpu.vector_store %arg6[%c0_12, %c0_13], %14 {strides = array<i32>} : memref<20x128xf32, #tpu.memory_space<vmem>>, vector<20x128xf32>,
    } else {
    }
    %c0 = arith.constant 0 : index
    %c0_1 = arith.constant 0 : index
    %3 = vector.load %arg6[%c0, %c0_1] : memref<20x128xf32, #tpu.memory_space<vmem>>, vector<20x128xf32>
    %c0_2 = arith.constant 0 : index
    %c0_3 = arith.constant 0 : index
    %4 = vector.load %arg2[%c0_2, %c0_3] : memref<20x256xbf16, #tpu.memory_space<vmem>>, vector<20x256xbf16>
    %c0_4 = arith.constant 0 : index
    %c0_5 = arith.constant 0 : index
    %5 = vector.load %arg3[%c0_4, %c0_5] : memref<256x128xbf16, #tpu.memory_space<vmem>>, vector<256x128xbf16>
    %cst = arith.constant dense<0.000000e+00> : vector<20x128xf32>
    %6 = tpu.matmul %4, %5, %cst {dimension_numbers = #tpu.dot_dimension_numbers<[1], [0], [0], [1], [0, 0, 1, 1], [], []>} : vector<20x256xbf16>, vector<256x128xbf16>, vector<20x128xf32> -> vector<20x128xf32>
    %7 = arith.addf %3, %6 : vector<20x128xf32>
    %c0_6 = arith.constant 0 : index
    %c0_7 = arith.constant 0 : index
    %8 = vector.load %arg6[%c0_6, %c0_7] : memref<20x128xf32, #tpu.memory_space<vmem>>, vector<20x128xf32>
    tpu.vector_store %arg6[%c0_6, %c0_7], %7 {strides = array<i32>} : memref<20x128xf32, #tpu.memory_space<vmem>>, vector<20x128xf32>,
    %c0_i32_8 = arith.constant 0 : i32
    %9 = arith.cmpi eq, %arg1, %c0_i32_8 : i32
    %10 = arith.extui %9 : i1 to i32
    %c0_i32_9 = arith.constant 0 : i32
    %11 = arith.cmpi ne, %10, %c0_i32_9 : i32
    scf.if %11 {
      %c0_10 = arith.constant 0 : index
      %c0_11 = arith.constant 0 : index
      %12 = vector.load %arg6[%c0_10, %c0_11] : memref<20x128xf32, #tpu.memory_space<vmem>>, vector<20x128xf32>
      %13 = arith.truncf %12 : vector<20x128xf32> to vector<20x128xbf16>
      %c0_12 = arith.constant 0 : index
      %c0_13 = arith.constant 0 : index
      %14 = vector.load %arg5[%c0_12, %c0_13] : memref<20x128xbf16, #tpu.memory_space<vmem>>, vector<20x128xbf16>
      tpu.vector_store %arg5[%c0_12, %c0_13], %13 {strides = array<i32>} : memref<20x128xbf16, #tpu.memory_space<vmem>>, vector<20x128xbf16>,
    } else {
    }
    return
  }
  func.func @transform_0(%arg0: i32, %arg1: i32) -> (i32, i32) {
    %c0_i32 = arith.constant 0 : i32
    %c0_i32_0 = arith.constant 0 : i32
    return %c0_i32, %arg1 : i32, i32
  }
  func.func @transform_1(%arg0: i32, %arg1: i32) -> (i32, i32) {
    %c0_i32 = arith.constant 0 : i32
    return %arg1, %arg0 : i32, i32
  }
  func.func @transform_2(%arg0: i32, %arg1: i32) -> (i32, i32) {
    %c0_i32 = arith.constant 0 : i32
    %c0_i32_0 = arith.constant 0 : i32
    return %c0_i32, %arg0 : i32, i32
  }
  func.func @transform_3(%arg0: i32, %arg1: i32) -> (i32, i32) {
    %c0_i32 = arith.constant 0 : i32
    %c0_i32_0 = arith.constant 0 : i32
    return %c0_i32, %arg0 : i32, i32
  }
}

</mosaic_0001>

<llo_original>
// kernel: tpu_custom_call.1
$region0: #{tpu_custom_call.1}
  #allocation0 [shape = 'u32[]', space=smem, size = 0x4, offset = 0x4, fixed_abs, tag = 'smem constant byte address 0x4 - core index']
  #allocation1 [shape = 'u32[144,128]{1,0:T(1,128)}', space=vmem, size = 0x12000, scoped, tag = 'internal scratch']
  #allocation2 [shape = 'f32[20,128]{1,0:T(8,128)}', space=vmem, size = 0x3000, scoped, tag = 'scratch operand']
  %s0 = inlined_call_operand.hbm [shape: bf16[20,256], index: 0, kind: input, shape index: {}]
  %s1 = inlined_call_operand.hbm [shape: bf16[256,256], index: 1, kind: input, shape index: {}]
  %s2 = inlined_call_operand.vmem [shape: f32[1,256], index: 2, kind: input, shape index: {}]
  %s3 = inlined_call_operand.hbm [shape: bf16[20,256], index: 3, kind: output, shape index: {}]
  %s4 = sld [smem:[#allocation0]]
  $region61: #{tpu_custom_call.1} parent=0
    _
  %s6 = ssub.s32 1, %s4
  %s7 = scalar_select 0, %s6, %s4
  $region1: #{tpu_custom_call.1} parent=0
    #allocation3 [shape = 'u8[12288]{0}', space=vmem, size = 0x3000, scoped, tag = 'input window, operand 0, single buffered']
    #allocation4 [shape = 's32[2]{0}', space=sflag, size = 0x8, scoped, tag = 'scoped memory for tpu_custom_call.1']
    #allocation5 [shape = 's32[2]{0}', space=sflag, size = 0x8, scoped, tag = 'scoped memory for tpu_custom_call.1']
    #allocation6 [shape = 'u8[131072]{0}', space=vmem, size = 0x20000, scoped, tag = 'input window, operand 1']
    #allocation7 [shape = 's32[2]{0}', space=sflag, size = 0x8, scoped, tag = 'scoped memory for tpu_custom_call.1']
    #allocation8 [shape = 'u8[12288]{0}', space=vmem, size = 0x3000, scoped, tag = 'output window, operand 0']
    %8 = vsyncpa [#allocation4], 0
    %9 = vsyncpa [#allocation7], 0
    %s10 = scalar_lea.sflag [#allocation7], 1
    %11 = vsyncpa %s10, 0
    %12 = vsyncpa [#allocation5], 0
    %s13 = scalar_lea.sflag [#allocation5], 1
    %14 = vsyncpa %s13, 0
    loop: start=0, step=1, limit=4
    $region2: #{tpu_custom_call.1} parent=1 // loop_pre_header
      _
    $region3: #{tpu_custom_call.1} parent=1 // loop_header
      %s16 = sphi 0, %s20
      %p17 = scmp.ge.s32.totalorder %s16, 4
      %s23 = sphi 0, %s35
      %s24 = sphi 0, %s31
      %s25 = sphi 0, %s23
      %s26 = sphi 0, %s24
      %s27 = sphi 0, %s25
      %s28 = sphi 0, %s26
      %s38 = sphi 0, %s40
      %s41 = sphi 0, %s38
      %s42 = sphi 0, %s41
      %s58 = sphi 0, %s42
      %s66 = sphi 0, %s68
      %s69 = sphi 0, %s66
      %s70 = sphi 0, %s69
      %s86 = sphi 0, %s70
      %s92 = sphi 0, %s94
      %s95 = sphi 0, %s92
      %s96 = sphi 0, %s95
      %s112 = sphi 0, %s96
      %s118 = sphi 0, %s120
      %s121 = sphi 0, %s118
      %s122 = sphi 0, %s121
      %s138 = sphi 0, %s122
    $region4: #{tpu_custom_call.1} parent=1 // loop_header_branch
      %19 = sbr.rel (%p17) target = $region8
    $region5: #{tpu_custom_call.1} parent=1 // loop_body
      %s21 = ssub.s32 %s16, 1
      %s22 = ssub.s32 %s16, 2
      %s29 = sadd.s32 1, %s24
      %p30 = scmp.ge.s32.totalorder %s29, 1
      %s31 = scalar_select %p30, 0, %s29
      %s32 = sadd.s32 1, %s23
      %s33 = scalar_select %p30, %s32, %s23
      %p34 = scmp.ge.s32.totalorder %s33, 2
      %s35 = scalar_select %p34, 0, %s33
      %s36 = ssub.s32 %s24, %s31
      %p37 = scmp.eq.s32.totalorder %s36, 0
      %s39 = sadd.s32 %s38, 1
      %s40 = scalar_select %p37, %s38, %s39
      %p43 = pneg %p37
      %p44 = scmp.eq.s32.totalorder %s16, 1
      %p45 = por %p43, %p44
      %p46 = scmp.ne.s32.totalorder %s38, %s41
      %p47 = scmp.eq.s32.totalorder %s16, 0
      %p48 = por %p46, %p47
      %p49 = scmp.ne.s32.totalorder %s38, %s41
      %p50 = scmp.eq.s32.totalorder %s21, 1
      %p51 = por %p49, %p50
      %p52 = scmp.ne.s32.totalorder %s41, %s42
      %p53 = scmp.eq.s32.totalorder %s21, 0
      %p54 = por %p52, %p53
      %p55 = scmp.ne.s32.totalorder %s41, %s42
      %p56 = scmp.eq.s32.totalorder %s22, 1
      %p57 = por %p55, %p56
      %p59 = scmp.ne.s32.totalorder %s42, %s58
      %p60 = scmp.eq.s32.totalorder %s22, 0
      %p61 = por %p59, %p60
      %s62 = ssub.s32 %s24, %s31
      %s63 = ssub.s32 %s23, %s35
      %s64 = sor.u32 %s62, %s63
      %p65 = scmp.eq.s32.totalorder %s64, 0
      %s67 = sadd.s32 %s66, 1
      %s68 = scalar_select %p65, %s66, %s67
      %p71 = pneg %p65
      %p72 = scmp.eq.s32.totalorder %s16, 1
      %p73 = por %p71, %p72
      %p74 = scmp.ne.s32.totalorder %s66, %s69
      %p75 = scmp.eq.s32.totalorder %s16, 0
      %p76 = por %p74, %p75
      %p77 = scmp.ne.s32.totalorder %s66, %s69
      %p78 = scmp.eq.s32.totalorder %s21, 1
      %p79 = por %p77, %p78
      %p80 = scmp.ne.s32.totalorder %s69, %s70
      %p81 = scmp.eq.s32.totalorder %s21, 0
      %p82 = por %p80, %p81
      %p83 = scmp.ne.s32.totalorder %s69, %s70
      %p84 = scmp.eq.s32.totalorder %s22, 1
      %p85 = por %p83, %p84
      %p87 = scmp.ne.s32.totalorder %s70, %s86
      %p88 = scmp.eq.s32.totalorder %s22, 0
      %p89 = por %p87, %p88
      %s90 = ssub.s32 %s23, %s35
      %p91 = scmp.eq.s32.totalorder %s90, 0
      %s93 = sadd.s32 %s92, 1
      %s94 = scalar_select %p91, %s92, %s93
      %p97 = pneg %p91
      %p98 = scmp.eq.s32.totalorder %s16, 1
      %p99 = por %p97, %p98
      %p100 = scmp.ne.s32.totalorder %s92, %s95
      %p101 = scmp.eq.s32.totalorder %s16, 0
      %p102 = por %p100, %p101
      %p103 = scmp.ne.s32.totalorder %s92, %s95
      %p104 = scmp.eq.s32.totalorder %s21, 1
      %p105 = por %p103, %p104
      %p106 = scmp.ne.s32.totalorder %s95, %s96
      %p107 = scmp.eq.s32.totalorder %s21, 0
      %p108 = por %p106, %p107
      %p109 = scmp.ne.s32.totalorder %s95, %s96
      %p110 = scmp.eq.s32.totalorder %s22, 1
      %p111 = por %p109, %p110
      %p113 = scmp.ne.s32.totalorder %s96, %s112
      %p114 = scmp.eq.s32.totalorder %s22, 0
      %p115 = por %p113, %p114
      %s116 = ssub.s32 %s23, %s35
      %p117 = scmp.eq.s32.totalorder %s116, 0
      %s119 = sadd.s32 %s118, 1
      %s120 = scalar_select %p117, %s118, %s119
      %p123 = pneg %p117
      %p124 = scmp.eq.s32.totalorder %s16, 1
      %p125 = por %p123, %p124
      %p126 = scmp.ne.s32.totalorder %s118, %s121
      %p127 = scmp.eq.s32.totalorder %s16, 0
      %p128 = por %p126, %p127
      %p129 = scmp.ne.s32.totalorder %s118, %s121
      %p130 = scmp.eq.s32.totalorder %s21, 1
      %p131 = por %p129, %p130
      %p132 = scmp.ne.s32.totalorder %s121, %s122
      %p133 = scmp.eq.s32.totalorder %s21, 0
      %p134 = por %p132, %p133
      %p135 = scmp.ne.s32.totalorder %s121, %s122
      %p136 = scmp.eq.s32.totalorder %s22, 1
      %p137 = por %p135, %p136
      %p139 = scmp.ne.s32.totalorder %s122, %s138
      %p140 = scmp.eq.s32.totalorder %s22, 0
      %p141 = por %p139, %p140
      %p142 = scmp.le.s32.totalorder 1, %s16
      %p143 = scmp.lt.s32.totalorder %s16, 3
      %p144 = pnand %p142, %p143
      %p145 = pneg %p144
      // Predicated region
      $region9: #{tpu_custom_call.1} parent=5 // pred_check
        _
      $region10: #{tpu_custom_call.1} parent=5 // pred_check_branch
        %147 = sbr.rel (%p144) target = $region12
      $region11: #{tpu_custom_call.1} parent=5 // pred_region
        %s148 = ssub.s32 %s16, 1
        // Predicated region
        $region13: #{tpu_custom_call.1} parent=11 // pred_check
          %p149 = pneg %p54
        $region14: #{tpu_custom_call.1} parent=11 // pred_check_branch
          %151 = sbr.rel (%p149) target = $region16
        $region15: #{tpu_custom_call.1} parent=11 // pred_region
          %s152 = smul.u32 2, %s26
          %s154 = ssub.s32 384, 384
          %155 = vsyncadd [#allocation4], %s154
          %s156 = smul.addr %s152, 64
          %s157 = scalar_lea.hbm %s0, %s156
          %s158 = sshll.u32 [#allocation3], 4
          %s159 = int_to_ptr.vmem [resolvable:$true] %s158
          %164 = dma.hbm_to_vmem [thread:$0]  %s157, 384, %s159, [#allocation4], 128, 128, 8
        $region16: #{tpu_custom_call.1} parent=11 // pred_fallthru
          _
      $region12: #{tpu_custom_call.1} parent=5 // pred_fallthru
        _
      %p165 = scmp.lt.s32.totalorder %s16, 2
      // Predicated region
      $region17: #{tpu_custom_call.1} parent=5 // pred_check
        %p166 = pneg %p165
      $region18: #{tpu_custom_call.1} parent=5 // pred_check_branch
        %168 = sbr.rel (%p166) target = $region20
      $region19: #{tpu_custom_call.1} parent=5 // pred_region
        // Predicated region
        $region21: #{tpu_custom_call.1} parent=19 // pred_check
          %p169 = pneg %p76
        $region22: #{tpu_custom_call.1} parent=19 // pred_check_branch
          %171 = sbr.rel (%p169) target = $region24
        $region23: #{tpu_custom_call.1} parent=19 // pred_region
          %s172 = sand.u32 %s66, 1
          %s173 = scalar_lea.sflag [#allocation7], %s172
          %s174 = sand.u32 %s66, 1
          %s175 = smul.addr %s174, 128
          %s176 = scalar_lea.vmem [#allocation6], %s175
          %s177 = smul.u32 32, %s24
          %s179 = ssub.s32 2048, 2048
          %180 = vsyncadd %s173, %s179
          %s181 = smul.addr %s177, 2
          %s182 = sadd.s32 %s23, %s181
          %s183 = smul.addr %s182, 64
          %s184 = scalar_lea.hbm %s1, %s183
          %s185 = sshll.u32 %s176, 4
          %s186 = int_to_ptr.vmem [resolvable:$true] %s185
          %191 = dma.hbm_to_vmem [thread:$0]  %s184, 2048, %s186, %s173, 128, 64, 4
        $region24: #{tpu_custom_call.1} parent=19 // pred_fallthru
          _
        // Predicated region
        $region25: #{tpu_custom_call.1} parent=19 // pred_check
          %p192 = pneg %p102
        $region26: #{tpu_custom_call.1} parent=19 // pred_check_branch
          %194 = sbr.rel (%p192) target = $region28
        $region27: #{tpu_custom_call.1} parent=19 // pred_region
          %p195 = scmp.lt.s32.totalorder %s23, 1
          %s196 = scalar_select %p195, %s23, 1
          %s197 = scalar_lea.vmem %s2, %s196
        $region28: #{tpu_custom_call.1} parent=19 // pred_fallthru
          _
      $region20: #{tpu_custom_call.1} parent=5 // pred_fallthru
        _
      %p198 = scmp.le.s32.totalorder 1, %s16
      %p199 = scmp.lt.s32.totalorder %s16, 3
      %p200 = pnand %p198, %p199
      %p201 = pneg %p200
      // Predicated region
      $region29: #{tpu_custom_call.1} parent=5 // pred_check
        _
      $region30: #{tpu_custom_call.1} parent=5 // pred_check_branch
        %203 = sbr.rel (%p200) target = $region32
      $region31: #{tpu_custom_call.1} parent=5 // pred_region
        %s204 = ssub.s32 %s16, 1
        // Predicated region
        $region33: #{tpu_custom_call.1} parent=31 // pred_check
          %p205 = pneg %p54
        $region34: #{tpu_custom_call.1} parent=31 // pred_check_branch
          %207 = sbr.rel (%p205) target = $region36
        $region35: #{tpu_custom_call.1} parent=31 // pred_region
          %208 = dma.done [#allocation4], 384
        $region36: #{tpu_custom_call.1} parent=31 // pred_fallthru
          _
        %s209 = sand.u32 %s69, 1
        %s210 = scalar_lea.sflag [#allocation7], %s209
        %s211 = sand.u32 %s69, 1
        %s212 = smul.addr %s211, 128
        %s213 = scalar_lea.vmem [#allocation6], %s212
        // Predicated region
        $region37: #{tpu_custom_call.1} parent=31 // pred_check
          %p214 = pneg %p82
        $region38: #{tpu_custom_call.1} parent=31 // pred_check_branch
          %216 = sbr.rel (%p214) target = $region40
        $region39: #{tpu_custom_call.1} parent=31 // pred_region
          %217 = dma.done %s210, 2048
        $region40: #{tpu_custom_call.1} parent=31 // pred_fallthru
          _
        %p218 = pneg %p54
        %p219 = pneg %p51
        %s220 = sand.u32 %s69, 1
        %s221 = scalar_lea.sflag [#allocation7], %s220
        %s222 = sand.u32 %s69, 1
        %s223 = smul.addr %s222, 128
        %s224 = scalar_lea.vmem [#allocation6], %s223
        %p225 = pneg %p82
        %p226 = pneg %p79
        %p227 = scmp.lt.s32.totalorder %s25, 1
        %s228 = scalar_select %p227, %s25, 1
        %s229 = scalar_lea.vmem %s2, %s228
        %p230 = pneg %p108
        %p231 = pneg %p105
        %p232 = pneg %p134
        %p233 = pneg %p131
        %s234 = sand.u32 %s121, 1
        %s235 = scalar_lea.sflag [#allocation5], %s234
        %s236 = sand.u32 %s121, 1
        %s237 = smul.addr %s236, 12
        %s238 = scalar_lea.vmem [#allocation8], %s237
        %s239 = smul.u32 2, %s26
        %s240 = smul.u32 32, %s26
        %p241 = scmp.lt.s32.totalorder %s25, 1
        %s242 = scalar_select %p241, %s25, 1
        %s243 = scalar_lea.vmem %s2, %s242
        %p245 = scmp.eq.s32.totalorder %s26, 0
        // Predicated region
        $region41: #{tpu_custom_call.1} parent=31 // pred_check
          %p246 = pneg %p245
        $region42: #{tpu_custom_call.1} parent=31 // pred_check_branch
          %248 = sbr.rel (%p246) target = $region44
        $region43: #{tpu_custom_call.1} parent=31 // pred_region
          %v249 = vld [vmem:[%s243] sm:$0x1]
          %v251 = vlaneseq
          %v252 = vshrl.u32 %v251, 7
          %v253 = vsub.s32 0, %v252
          %v254 = vrot.slane %v249, %v253
          %256 = vst [vmem:[#allocation2] sm:$0xff] %v254
          %257 = vst [vmem:[#allocation2 + $0x8] sm:$0xff] %v254
          %258 = vst [vmem:[#allocation2 + $0x10] sm:$0xf] %v254
        $region44: #{tpu_custom_call.1} parent=31 // pred_fallthru
          _
        %v259 = vld [vmem:[#allocation2] sm:$0xff]
        %v260 = vld [vmem:[#allocation2 + $0x8] sm:$0xff]
        %v261 = vld [vmem:[#allocation2 + $0x10] sm:$0xf]
        %v262 = vld [vmem:[#allocation3] sm:$0xff]
        %v263 = vld [vmem:[#allocation3 + $0x8] sm:$0xff]
        %v264 = vld [vmem:[#allocation3 + $0x10] sm:$0x33]
        %v265 = vld [vmem:[%s213] sm:$0xf]
        %v266 = vld [vmem:[%s213 + $0x4] sm:$0xf]
        %v267 = vld [vmem:[%s213 + $0x8] sm:$0xf]
        %v268 = vld [vmem:[%s213 + $0xc] sm:$0xf]
        %v269 = vld [vmem:[%s213 + $0x10] sm:$0xf]
        %v270 = vld [vmem:[%s213 + $0x14] sm:$0xf]
        %v271 = vld [vmem:[%s213 + $0x18] sm:$0xf]
        %v272 = vld [vmem:[%s213 + $0x1c] sm:$0xf]
        %v273 = vld [vmem:[%s213 + $0x20] sm:$0xf]
        %v274 = vld [vmem:[%s213 + $0x24] sm:$0xf]
        %v275 = vld [vmem:[%s213 + $0x28] sm:$0xf]
        %v276 = vld [vmem:[%s213 + $0x2c] sm:$0xf]
        %v277 = vld [vmem:[%s213 + $0x30] sm:$0xf]
        %v278 = vld [vmem:[%s213 + $0x34] sm:$0xf]
        %v279 = vld [vmem:[%s213 + $0x38] sm:$0xf]
        %v280 = vld [vmem:[%s213 + $0x3c] sm:$0xf]
        %v281 = vld [vmem:[%s213 + $0x40] sm:$0xf]
        %v282 = vld [vmem:[%s213 + $0x44] sm:$0xf]
        %v283 = vld [vmem:[%s213 + $0x48] sm:$0xf]
        %v284 = vld [vmem:[%s213 + $0x4c] sm:$0xf]
        %v285 = vld [vmem:[%s213 + $0x50] sm:$0xf]
        %v286 = vld [vmem:[%s213 + $0x54] sm:$0xf]
        %v287 = vld [vmem:[%s213 + $0x58] sm:$0xf]
        %v288 = vld [vmem:[%s213 + $0x5c] sm:$0xf]
        %v289 = vld [vmem:[%s213 + $0x60] sm:$0xf]
        %v290 = vld [vmem:[%s213 + $0x64] sm:$0xf]
        %v291 = vld [vmem:[%s213 + $0x68] sm:$0xf]
        %v292 = vld [vmem:[%s213 + $0x6c] sm:$0xf]
        %v293 = vld [vmem:[%s213 + $0x70] sm:$0xf]
        %v294 = vld [vmem:[%s213 + $0x74] sm:$0xf]
        %v295 = vld [vmem:[%s213 + $0x78] sm:$0xf]
        %v296 = vld [vmem:[%s213 + $0x7c] sm:$0xf]
        %v300 = vunpack.c.l.b16 %v262
        %v301 = vunpack.c.h.b16 %v262
        %v302 = vunpack.c.l.b16 %v263
        %v303 = vunpack.c.h.b16 %v263
        %v304 = vunpack.c.l.b16 %v264
        %v305 = vunpack.c.h.b16 %v264
        %v306 = vpack.c.b16 %v302, %v300
        %v307 = vpack.c.b16 %v303, %v301
        %v308 = vpack.c.b16 %v304, %v304
        %v309 = vpack.c.b16 %v305, %v305
        %v346 = vunpack.c.l.b16 %v265
        %v347 = vunpack.c.l.b16 %v266
        %v348 = vunpack.c.l.b16 %v267
        %v349 = vunpack.c.l.b16 %v268
        %v350 = vunpack.c.l.b16 %v269
        %v351 = vunpack.c.l.b16 %v270
        %v352 = vunpack.c.l.b16 %v271
        %v353 = vunpack.c.l.b16 %v272
        %v354 = vunpack.c.l.b16 %v273
        %v355 = vunpack.c.l.b16 %v274
        %v356 = vunpack.c.l.b16 %v275
        %v357 = vunpack.c.l.b16 %v276
        %v358 = vunpack.c.l.b16 %v277
        %v359 = vunpack.c.l.b16 %v278
        %v360 = vunpack.c.l.b16 %v279
        %v361 = vunpack.c.l.b16 %v280
        %v362 = vunpack.c.l.b16 %v281
        %v363 = vunpack.c.l.b16 %v282
        %v364 = vunpack.c.l.b16 %v283
        %v365 = vunpack.c.l.b16 %v284
        %v366 = vunpack.c.l.b16 %v285
        %v367 = vunpack.c.l.b16 %v286
        %v368 = vunpack.c.l.b16 %v287
        %v369 = vunpack.c.l.b16 %v288
        %v370 = vunpack.c.l.b16 %v289
        %v371 = vunpack.c.l.b16 %v290
        %v372 = vunpack.c.l.b16 %v291
        %v373 = vunpack.c.l.b16 %v292
        %v374 = vunpack.c.l.b16 %v293
        %v375 = vunpack.c.l.b16 %v294
        %v376 = vunpack.c.l.b16 %v295
        %v377 = vunpack.c.l.b16 %v296
        %v378 = vpack.c.b16 %v347, %v346
        %v379 = vpack.c.b16 %v349, %v348
        %v380 = vpack.c.b16 %v351, %v350
        %v381 = vpack.c.b16 %v353, %v352
        %v382 = vpack.c.b16 %v355, %v354
        %v383 = vpack.c.b16 %v357, %v356
        %v384 = vpack.c.b16 %v359, %v358
        %v385 = vpack.c.b16 %v361, %v360
        %v386 = vpack.c.b16 %v363, %v362
        %v387 = vpack.c.b16 %v365, %v364
        %v388 = vpack.c.b16 %v367, %v366
        %v389 = vpack.c.b16 %v369, %v368
        %v390 = vpack.c.b16 %v371, %v370
        %v391 = vpack.c.b16 %v373, %v372
        %v392 = vpack.c.b16 %v375, %v374
        %v393 = vpack.c.b16 %v377, %v376
        %410 = vmatprep.subr.bf16.mxu0 0
        %411 = vmatpush1.bf16.msra.mxu0 %v385
        %412 = vmatprep.subr.bf16.mxu0 0
        %413 = vmatpush1.bf16.msra.mxu0 %v384
        %414 = vmatprep.subr.bf16.mxu0 0
        %415 = vmatpush1.bf16.msra.mxu0 %v383
        %416 = vmatprep.subr.bf16.mxu0 0
        %417 = vmatpush1.bf16.msra.mxu0 %v382
        %418 = vmatprep.subr.bf16.mxu0 0
        %419 = vmatpush1.bf16.msra.mxu0 %v381
        %420 = vmatprep.subr.bf16.mxu0 0
        %421 = vmatpush1.bf16.msra.mxu0 %v380
        %422 = vmatprep.subr.bf16.mxu0 0
        %423 = vmatpush1.bf16.msra.mxu0 %v379
        %424 = vmatprep.subr.bf16.mxu0 0
        %425 = vmatpush1.bf16.msra.mxu0 %v378
        %426 = vmatprep.subr.bf16.mxu0 0
        %427 = vmatpush2.bf16.msra.mxu0 %v393
        %428 = vmatprep.subr.bf16.mxu0 0
        %429 = vmatpush2.bf16.msra.mxu0 %v392
        %430 = vmatprep.subr.bf16.mxu0 0
        %431 = vmatpush2.bf16.msra.mxu0 %v391
        %432 = vmatprep.subr.bf16.mxu0 0
        %433 = vmatpush2.bf16.msra.mxu0 %v390
        %434 = vmatprep.subr.bf16.mxu0 0
        %435 = vmatpush2.bf16.msra.mxu0 %v389
        %436 = vmatprep.subr.bf16.mxu0 0
        %437 = vmatpush2.bf16.msra.mxu0 %v388
        %438 = vmatprep.subr.bf16.mxu0 0
        %439 = vmatpush2.bf16.msra.mxu0 %v387
        %440 = vmatprep.subr.bf16.mxu0 0
        %441 = vmatpush2.bf16.msra.mxu0 %v386
        %442 = vmatprep.mubr.bf16.mxu0 %v307
        %443 = vmatmul.mubr.bf16.gmra.mxu0 %v306
        %v444 = vpop.f32.mrf.mxu0
        %v445 = vadd.f32 0.0, %v444
        %v446 = vpop.f32.mrf.mxu0
        %v447 = vpop.f32.mrf.mxu0
        %v448 = vadd.f32 0.0, %v447
        %v449 = vpop.f32.mrf.mxu0
        %450 = vmatprep.mubr.bf16.mxu0 %v309
        %451 = vmatmul.mubr.bf16.gmra.mxu0 %v308
        %v452 = vpop.f32.mrf.mxu0
        %v453 = vadd.f32 0.0, %v452
        %v454 = vpop.f32.mrf.mxu0
        %v455 = vpop.f32.mrf.mxu0
        %v456 = vpop.f32.mrf.mxu0
        %457 = vdwg.mxu0
        %v458 = vadd.f32 %v259, %v445
        %v459 = vadd.f32 %v260, %v448
        %v460 = vadd.f32 %v261, %v453
        %461 = vst [vmem:[#allocation2] sm:$0xff] %v458
        %462 = vst [vmem:[#allocation2 + $0x8] sm:$0xff] %v459
        %463 = vst [vmem:[#allocation2 + $0x10] sm:$0xf] %v460
        // Predicated region
        $region45: #{tpu_custom_call.1} parent=31 // pred_check
          %p464 = pneg %p245
        $region46: #{tpu_custom_call.1} parent=31 // pred_check_branch
          %466 = sbr.rel (%p464) target = $region48
        $region47: #{tpu_custom_call.1} parent=31 // pred_region
          %v467 = vld [vmem:[#allocation2] sm:$0xff]
          %v468 = vld [vmem:[#allocation2 + $0x8] sm:$0xff]
          %v469 = vld [vmem:[#allocation2 + $0x10] sm:$0xf]
          %v470 = vpack.c.bf16 %v468, %v467
          %v471 = vpack.c.bf16 %v469, %v469
          %v474 = vunpack.c.l.b16 %v470
          %v475 = vunpack.c.h.b16 %v470
          %v476 = vunpack.c.l.b16 %v471
          %v477 = vpack.c.b16 %v474, %v474
          %v478 = vpack.c.b16 %v475, %v475
          %v479 = vpack.c.b16 %v476, %v476
          %483 = vst [vmem:[%s238] sm:$0xf] %v477
          %484 = vst [vmem:[%s238 + $0x4] sm:$0xf] %v478
          %485 = vst [vmem:[%s238 + $0x8] sm:$0x3] %v479
        $region48: #{tpu_custom_call.1} parent=31 // pred_fallthru
          _
        %s486 = sand.u32 %s121, 1
        %s487 = scalar_lea.sflag [#allocation5], %s486
        %s488 = sand.u32 %s121, 1
        %s489 = smul.addr %s488, 12
        %s490 = scalar_lea.vmem [#allocation8], %s489
        // Predicated region
        $region49: #{tpu_custom_call.1} parent=31 // pred_check
          %p491 = pneg %p131
        $region50: #{tpu_custom_call.1} parent=31 // pred_check_branch
          %493 = sbr.rel (%p491) target = $region52
        $region51: #{tpu_custom_call.1} parent=31 // pred_region
          %s495 = ssub.s32 192, 192
          %496 = vsyncadd %s487, %s495
          %s497 = smul.addr %s25, 64
          %s498 = scalar_lea.hbm %s3, %s497
          %s499 = sshll.u32 %s490, 4
          %s500 = int_to_ptr.vmem [resolvable:$true] %s499
          %505 = dma.vmem_to_hbm [thread:$0]  %s500, 192, %s498, %s487, 64, 128, 4
        $region52: #{tpu_custom_call.1} parent=31 // pred_fallthru
          _
      $region32: #{tpu_custom_call.1} parent=5 // pred_fallthru
        _
      %p506 = scmp.le.s32.totalorder 2, %s16
      // Predicated region
      $region53: #{tpu_custom_call.1} parent=5 // pred_check
        %p507 = pneg %p506
      $region54: #{tpu_custom_call.1} parent=5 // pred_check_branch
        %509 = sbr.rel (%p507) target = $region56
      $region55: #{tpu_custom_call.1} parent=5 // pred_region
        %s510 = ssub.s32 %s16, 2
        // Predicated region
        $region57: #{tpu_custom_call.1} parent=55 // pred_check
          %p511 = pneg %p137
        $region58: #{tpu_custom_call.1} parent=55 // pred_check_branch
          %513 = sbr.rel (%p511) target = $region60
        $region59: #{tpu_custom_call.1} parent=55 // pred_region
          %s514 = sand.u32 %s122, 1
          %s515 = scalar_lea.sflag [#allocation5], %s514
          %s516 = sand.u32 %s122, 1
          %s517 = smul.addr %s516, 12
          %s518 = scalar_lea.vmem [#allocation8], %s517
          %519 = dma.done %s515, 192
        $region60: #{tpu_custom_call.1} parent=55 // pred_fallthru
          _
      $region56: #{tpu_custom_call.1} parent=5 // pred_fallthru
        _
    $region6: #{tpu_custom_call.1} parent=1 // loop_footer
      %s20 = sadd.s32 1, %s16
    $region7: #{tpu_custom_call.1} parent=1 // loop_footer_branch
      %15 = sbr.rel target = $region3
    $region8: #{tpu_custom_call.1} parent=1 // loop_exit
      _
    %520 = vsyncpa [#allocation4], 1
    %s521 = scalar_lea.sflag [#allocation4], 1
    %522 = vsyncpa %s521, 1
    %523 = vsyncpa [#allocation7], 1
    %s524 = scalar_lea.sflag [#allocation7], 1
    %525 = vsyncpa %s524, 1
    %526 = vsyncpa [#allocation5], 1
    %s527 = scalar_lea.sflag [#allocation5], 1
    %528 = vsyncpa %s527, 1

</llo_original>
